<compile_context>
chip_gen: v5e
topology: v5e:2x2
jax: 0.10.0
libtpu: 0.0.40
codegen_flags: <defaults>
</compile_context>

<pallas_src>
import math

import jax
import jax.numpy as jnp
from jax.experimental import pallas as pl
from jax.experimental.pallas import tpu as pltpu

_SCALE = 1.67653251702
_LANES = 128
_SUBLANES = 8
_TARGET_BLOCK_BYTES = 4 * 1024 * 1024   # ~4 MiB per block (per perf review)
_VMEM_LIMIT_BYTES = 40 * 1024 * 1024    # 4x 4 MiB pipeline buffers + headroom


def _silu_kernel(x_ref, o_ref):
    xf = x_ref[...].astype(jnp.float32)
    o_ref[...] = (_SCALE * xf * jax.nn.sigmoid(xf)).astype(o_ref.dtype)


def _silu_jnp(x):
    """Pure-JAX reference (same math, same scale)."""
    xf = x.astype(jnp.float32)
    return (_SCALE * xf * jax.nn.sigmoid(xf)).astype(x.dtype)


def silu(x):
    """Elementwise scaled-SiLU for any shape / float dtype."""
    orig_shape = x.shape
    dtype = x.dtype
    n = x.size
    if n == 0 or x.ndim == 0:
        # Degenerate cases: nothing to stream.
        return _silu_jnp(x)

    itemsize = jnp.dtype(dtype).itemsize

    # Collapse ONLY the dims above the last two.  This never regroups the
    # (8,128)-tiled trailing dims, so the reshape is layout-preserving and
    # adds no HBM traffic across the pallas_call (custom-call) boundary.
    if x.ndim == 1:
        B, S, L = 1, 1, orig_shape[0]
    elif x.ndim == 2:
        B, S, L = 1, orig_shape[0], orig_shape[1]
    else:
        B = math.prod(orig_shape[:-2])
        S, L = orig_shape[-2], orig_shape[-1]
    x3 = x.reshape(B, S, L)

    # VMEM footprint of one (S, L) slab, accounting for lane/sublane padding.
    padded_L = -(-L // _LANES) * _LANES
    padded_S = -(-S // _SUBLANES) * _SUBLANES
    row_bytes = padded_L * itemsize
    slab_bytes = padded_S * row_bytes

    if slab_bytes <= _TARGET_BLOCK_BYTES:
        # Tile along the collapsed leading dim only; keep the full (S, L)
        # trailing dims (always satisfies the (8,128)/full-dim rule).
        tile_s = S
        tile_b = max(1, min(B, _TARGET_BLOCK_BYTES // slab_bytes))
    else:
        # One slab is too big: tile along S in multiples of 8 sublanes,
        # keep the full last dim L.
        tile_b = 1
        tile_s = max(
            _SUBLANES,
            (_TARGET_BLOCK_BYTES // row_bytes) // _SUBLANES * _SUBLANES,
        )
        if tile_s >= S:
            tile_s = S

    # Guarantee >= 2 grid steps when the input is splittable so that on v7x
    # (2 TensorCores/chip) both cores stream; the extra step is ~0.35 us.
    if pl.cdiv(B, tile_b) * pl.cdiv(S, tile_s) == 1:
        if B >= 2:
            tile_b = pl.cdiv(B, 2)
        elif S >= 2 * _SUBLANES:
            tile_s = -(-pl.cdiv(S, 2) // _SUBLANES) * _SUBLANES

    grid = (pl.cdiv(B, tile_b), pl.cdiv(S, tile_s))

    cost = pl.CostEstimate(
        flops=3 * n,
        transcendentals=n,
        bytes_accessed=2 * n * itemsize,
    )

    out3 = pl.pallas_call(
        _silu_kernel,
        out_shape=jax.ShapeDtypeStruct((B, S, L), dtype),
        grid_spec=pltpu.PrefetchScalarGridSpec(
            num_scalar_prefetch=0,
            grid=grid,
            in_specs=[pl.BlockSpec((tile_b, tile_s, L), lambda i, j: (i, j, 0))],
            out_specs=pl.BlockSpec((tile_b, tile_s, L), lambda i, j: (i, j, 0)),
        ),
        compiler_params=pltpu.CompilerParams(
            dimension_semantics=("parallel", "parallel"),
            vmem_limit_bytes=_VMEM_LIMIT_BYTES,
        ),
        cost_estimate=cost,
    )(x3)

    # Leading-dims-only reshape back: layout-preserving, no HBM pass.
    return out3.reshape(orig_shape)


if __name__ == "__main__":
    key = jax.random.PRNGKey(0)

    # NCHW input consistent with the module's typical use.
    x = jax.random.normal(key, (2, 4, 16, 16), dtype=jnp.float32)
    y = jax.block_until_ready(silu(x))
    assert y.shape == x.shape and y.dtype == x.dtype
    assert jnp.allclose(y, _silu_jnp(x), atol=1e-5, rtol=1e-5)

    # Non-(8,128)-aligned shape: exercises partial boundary blocks with no
    # padding / concat / slice copies in the wrapper.
    x2 = jax.random.normal(key, (3, 5, 7, 11), dtype=jnp.float32)
    y2 = jax.block_until_ready(silu(x2))
    assert jnp.allclose(y2, _silu_jnp(x2), atol=1e-5, rtol=1e-5)

    print("KERNEL_OK")
</pallas_src>

<mosaic_0001>
module attributes {stable_mosaic.version = 11 : i64} {
  func.func @_silu_kernel(%arg0: i32, %arg1: i32, %arg2: memref<4x16x16xf32, #tpu.memory_space<vmem>>, %arg3: memref<4x16x16xf32, #tpu.memory_space<vmem>>) attributes {dimension_semantics = [#tpu.dimension_semantics<parallel>, #tpu.dimension_semantics<parallel>], iteration_bounds = array<i64: 2, 1>, scalar_prefetch = 0 : i64, scratch_operands = 0 : i64, tpu.core_type = #tpu.core_type<tc>, window_params = [{transform_indices = @transform_0, window_bounds = array<i64: 4, 16, 16>}, {transform_indices = @transform_1, window_bounds = array<i64: 4, 16, 16>}]} {
    %c0 = arith.constant 0 : index
    %c0_0 = arith.constant 0 : index
    %c0_1 = arith.constant 0 : index
    %0 = vector.load %arg2[%c0, %c0_0, %c0_1] : memref<4x16x16xf32, #tpu.memory_space<vmem>>, vector<4x16x16xf32>
    %cst = arith.constant 1.67653251 : f32
    %1 = vector.broadcast %cst : f32 to vector<4x16x16xf32>
    %2 = arith.mulf %1, %0 : vector<4x16x16xf32>
    %3 = arith.negf %0 : vector<4x16x16xf32>
    %4 = math.exp %3 : vector<4x16x16xf32>
    %cst_2 = arith.constant 1.000000e+00 : f32
    %5 = vector.broadcast %cst_2 : f32 to vector<4x16x16xf32>
    %6 = arith.addf %5, %4 : vector<4x16x16xf32>
    %7 = arith.divf %5, %6 : vector<4x16x16xf32>
    %8 = arith.mulf %2, %7 : vector<4x16x16xf32>
    %c0_3 = arith.constant 0 : index
    %c0_4 = arith.constant 0 : index
    %c0_5 = arith.constant 0 : index
    %9 = vector.load %arg3[%c0_3, %c0_4, %c0_5] : memref<4x16x16xf32, #tpu.memory_space<vmem>>, vector<4x16x16xf32>
    tpu.vector_store %arg3[%c0_3, %c0_4, %c0_5], %8 {strides = array<i32>} : memref<4x16x16xf32, #tpu.memory_space<vmem>>, vector<4x16x16xf32>,
    return
  }
  func.func @transform_0(%arg0: i32, %arg1: i32) -> (i32, i32, i32) {
    %c0_i32 = arith.constant 0 : i32
    %c0_i32_0 = arith.constant 0 : i32
    return %arg0, %arg1, %c0_i32 : i32, i32, i32
  }
  func.func @transform_1(%arg0: i32, %arg1: i32) -> (i32, i32, i32) {
    %c0_i32 = arith.constant 0 : i32
    %c0_i32_0 = arith.constant 0 : i32
    return %arg0, %arg1, %c0_i32 : i32, i32, i32
  }
}

</mosaic_0001>

<llo_original>
// kernel: tpu_custom_call.1
$region0: #{tpu_custom_call.1}
  #allocation0 [shape = 'u32[]', space=smem, size = 0x4, offset = 0x4, fixed_abs, tag = 'smem constant byte address 0x4 - core index']
  #allocation1 [shape = 'u32[72,128]{1,0:T(1,128)}', space=vmem, size = 0x9000, scoped, tag = 'internal scratch']
  %s0 = inlined_call_operand.hbm [shape: f32[8,16,16], index: 0, kind: input, shape index: {}]
  %s1 = inlined_call_operand.hbm [shape: f32[8,16,16], index: 1, kind: output, shape index: {}]
  %s2 = sld [smem:[#allocation0]]
  $region41: #{tpu_custom_call.1} parent=0
    _
  %s4 = ssub.s32 1, %s2
  %s5 = scalar_select 0, %s4, %s2
  $region1: #{tpu_custom_call.1} parent=0
    #allocation2 [shape = 'u8[65536]{0}', space=vmem, size = 0x10000, scoped, tag = 'input window, operand 0']
    #allocation3 [shape = 's32[2]{0}', space=sflag, size = 0x8, scoped, tag = 'scoped memory for tpu_custom_call.1']
    #allocation4 [shape = 's32[2]{0}', space=sflag, size = 0x8, scoped, tag = 'scoped memory for tpu_custom_call.1']
    #allocation5 [shape = 'u8[65536]{0}', space=vmem, size = 0x10000, scoped, tag = 'output window, operand 0']
    %6 = vsyncpa [#allocation3], 0
    %s7 = scalar_lea.sflag [#allocation3], 1
    %8 = vsyncpa %s7, 0
    %9 = vsyncpa [#allocation4], 0
    %s10 = scalar_lea.sflag [#allocation4], 1
    %11 = vsyncpa %s10, 0
    loop: start=0, step=1, limit=4
    $region2: #{tpu_custom_call.1} parent=1 // loop_pre_header
      _
    $region3: #{tpu_custom_call.1} parent=1 // loop_header
      %s13 = sphi 0, %s17
      %p14 = scmp.ge.s32.totalorder %s13, 4
      %s20 = sphi 0, %s32
      %s21 = sphi 0, %s28
      %s22 = sphi 0, %s20
      %s23 = sphi 0, %s21
      %s24 = sphi 0, %s22
      %s25 = sphi 0, %s23
      %s37 = sphi 0, %s39
      %s40 = sphi 0, %s37
      %s41 = sphi 0, %s40
      %s57 = sphi 0, %s41
      %s65 = sphi 0, %s67
      %s68 = sphi 0, %s65
      %s69 = sphi 0, %s68
      %s85 = sphi 0, %s69
    $region4: #{tpu_custom_call.1} parent=1 // loop_header_branch
      %16 = sbr.rel (%p14) target = $region8
    $region5: #{tpu_custom_call.1} parent=1 // loop_body
      %s18 = ssub.s32 %s13, 1
      %s19 = ssub.s32 %s13, 2
      %s26 = sadd.s32 1, %s21
      %p27 = scmp.ge.s32.totalorder %s26, 1
      %s28 = scalar_select %p27, 0, %s26
      %s29 = sadd.s32 1, %s20
      %s30 = scalar_select %p27, %s29, %s20
      %p31 = scmp.ge.s32.totalorder %s30, 2
      %s32 = scalar_select %p31, 0, %s30
      %s33 = ssub.s32 %s20, %s32
      %s34 = ssub.s32 %s21, %s28
      %s35 = sor.u32 %s33, %s34
      %p36 = scmp.eq.s32.totalorder %s35, 0
      %s38 = sadd.s32 %s37, 1
      %s39 = scalar_select %p36, %s37, %s38
      %p42 = pneg %p36
      %p43 = scmp.eq.s32.totalorder %s13, 1
      %p44 = por %p42, %p43
      %p45 = scmp.ne.s32.totalorder %s37, %s40
      %p46 = scmp.eq.s32.totalorder %s13, 0
      %p47 = por %p45, %p46
      %p48 = scmp.ne.s32.totalorder %s37, %s40
      %p49 = scmp.eq.s32.totalorder %s18, 1
      %p50 = por %p48, %p49
      %p51 = scmp.ne.s32.totalorder %s40, %s41
      %p52 = scmp.eq.s32.totalorder %s18, 0
      %p53 = por %p51, %p52
      %p54 = scmp.ne.s32.totalorder %s40, %s41
      %p55 = scmp.eq.s32.totalorder %s19, 1
      %p56 = por %p54, %p55
      %p58 = scmp.ne.s32.totalorder %s41, %s57
      %p59 = scmp.eq.s32.totalorder %s19, 0
      %p60 = por %p58, %p59
      %s61 = ssub.s32 %s20, %s32
      %s62 = ssub.s32 %s21, %s28
      %s63 = sor.u32 %s61, %s62
      %p64 = scmp.eq.s32.totalorder %s63, 0
      %s66 = sadd.s32 %s65, 1
      %s67 = scalar_select %p64, %s65, %s66
      %p70 = pneg %p64
      %p71 = scmp.eq.s32.totalorder %s13, 1
      %p72 = por %p70, %p71
      %p73 = scmp.ne.s32.totalorder %s65, %s68
      %p74 = scmp.eq.s32.totalorder %s13, 0
      %p75 = por %p73, %p74
      %p76 = scmp.ne.s32.totalorder %s65, %s68
      %p77 = scmp.eq.s32.totalorder %s18, 1
      %p78 = por %p76, %p77
      %p79 = scmp.ne.s32.totalorder %s68, %s69
      %p80 = scmp.eq.s32.totalorder %s18, 0
      %p81 = por %p79, %p80
      %p82 = scmp.ne.s32.totalorder %s68, %s69
      %p83 = scmp.eq.s32.totalorder %s19, 1
      %p84 = por %p82, %p83
      %p86 = scmp.ne.s32.totalorder %s69, %s85
      %p87 = scmp.eq.s32.totalorder %s19, 0
      %p88 = por %p86, %p87
      %p89 = scmp.le.s32.totalorder 1, %s13
      %p90 = scmp.lt.s32.totalorder %s13, 3
      %p91 = pnand %p89, %p90
      %p92 = pneg %p91
      // Predicated region
      $region9: #{tpu_custom_call.1} parent=5 // pred_check
        _
      $region10: #{tpu_custom_call.1} parent=5 // pred_check_branch
        %94 = sbr.rel (%p91) target = $region12
      $region11: #{tpu_custom_call.1} parent=5 // pred_region
        %s95 = ssub.s32 %s13, 1
      $region12: #{tpu_custom_call.1} parent=5 // pred_fallthru
        _
      %p96 = scmp.lt.s32.totalorder %s13, 2
      // Predicated region
      $region13: #{tpu_custom_call.1} parent=5 // pred_check
        %p97 = pneg %p96
      $region14: #{tpu_custom_call.1} parent=5 // pred_check_branch
        %99 = sbr.rel (%p97) target = $region16
      $region15: #{tpu_custom_call.1} parent=5 // pred_region
        // Predicated region
        $region17: #{tpu_custom_call.1} parent=15 // pred_check
          %p100 = pneg %p47
        $region18: #{tpu_custom_call.1} parent=15 // pred_check_branch
          %102 = sbr.rel (%p100) target = $region20
        $region19: #{tpu_custom_call.1} parent=15 // pred_region
          %s103 = sand.u32 %s37, 1
          %s104 = scalar_lea.sflag [#allocation3], %s103
          %s105 = sand.u32 %s37, 1
          %s106 = smul.addr %s105, 64
          %s107 = scalar_lea.vmem [#allocation2], %s106
          %s108 = smul.u32 4, %s20
          %s109 = smul.u32 2, %s21
          %111 = vsyncadd %s104, 0
          %s112 = smul.addr %s108, 2
          %s113 = sadd.s32 %s109, %s112
          %s114 = smul.addr %s113, 8
          %s115 = scalar_lea.hbm %s0, %s114
          %s116 = sshll.u32 %s115, 4
          %s117 = int_to_ptr.hbm [resolvable:$true] %s116
          %s118 = sshll.u32 %s107, 4
          %s119 = int_to_ptr.vmem [resolvable:$true] %s118
          %124 = dma.hbm_to_vmem [thread:$0]  %s117, 1024, %s119, %s104, 128, 128, 8
        $region20: #{tpu_custom_call.1} parent=15 // pred_fallthru
          _
      $region16: #{tpu_custom_call.1} parent=5 // pred_fallthru
        _
      %p125 = scmp.le.s32.totalorder 1, %s13
      %p126 = scmp.lt.s32.totalorder %s13, 3
      %p127 = pnand %p125, %p126
      %p128 = pneg %p127
      // Predicated region
      $region21: #{tpu_custom_call.1} parent=5 // pred_check
        _
      $region22: #{tpu_custom_call.1} parent=5 // pred_check_branch
        %130 = sbr.rel (%p127) target = $region24
      $region23: #{tpu_custom_call.1} parent=5 // pred_region
        %s131 = ssub.s32 %s13, 1
        %s132 = sand.u32 %s40, 1
        %s133 = scalar_lea.sflag [#allocation3], %s132
        %s134 = sand.u32 %s40, 1
        %s135 = smul.addr %s134, 64
        %s136 = scalar_lea.vmem [#allocation2], %s135
        // Predicated region
        $region25: #{tpu_custom_call.1} parent=23 // pred_check
          %p137 = pneg %p53
        $region26: #{tpu_custom_call.1} parent=23 // pred_check_branch
          %139 = sbr.rel (%p137) target = $region28
        $region27: #{tpu_custom_call.1} parent=23 // pred_region
          %141 = dma.done %s133, 1024
        $region28: #{tpu_custom_call.1} parent=23 // pred_fallthru
          _
        %s142 = sand.u32 %s40, 1
        %s143 = scalar_lea.sflag [#allocation3], %s142
        %s144 = sand.u32 %s40, 1
        %s145 = smul.addr %s144, 64
        %s146 = scalar_lea.vmem [#allocation2], %s145
        %p147 = pneg %p53
        %p148 = pneg %p50
        %p149 = pneg %p81
        %p150 = pneg %p78
        %s151 = sand.u32 %s68, 1
        %s152 = scalar_lea.sflag [#allocation4], %s151
        %s153 = sand.u32 %s68, 1
        %s154 = smul.addr %s153, 64
        %s155 = scalar_lea.vmem [#allocation5], %s154
        %s156 = smul.u32 4, %s22
        %s157 = smul.u32 2, %s23
        %s158 = smul.u32 4, %s22
        %s159 = smul.u32 2, %s23
        %v160 = vld [vmem:[%s136] sm:$0xff]
        %v161 = vld [vmem:[%s136 + $0x8] sm:$0xff]
        %v162 = vld [vmem:[%s136 + $0x10] sm:$0xff]
        %v163 = vld [vmem:[%s136 + $0x18] sm:$0xff]
        %v164 = vld [vmem:[%s136 + $0x20] sm:$0xff]
        %v165 = vld [vmem:[%s136 + $0x28] sm:$0xff]
        %v166 = vld [vmem:[%s136 + $0x30] sm:$0xff]
        %v167 = vld [vmem:[%s136 + $0x38] sm:$0xff]
        %v168 = vmul.f32 %v160, 1.6765325
        %v169 = vmul.f32 %v161, 1.6765325
        %v170 = vmul.f32 %v162, 1.6765325
        %v171 = vmul.f32 %v163, 1.6765325
        %v172 = vmul.f32 %v164, 1.6765325
        %v173 = vmul.f32 %v165, 1.6765325
        %v174 = vmul.f32 %v166, 1.6765325
        %v175 = vmul.f32 %v167, 1.6765325
        %v176 = vxor.u32 %v160, 2147483648
        %v177 = vxor.u32 %v161, 2147483648
        %v178 = vxor.u32 %v162, 2147483648
        %v179 = vxor.u32 %v163, 2147483648
        %v180 = vxor.u32 %v164, 2147483648
        %v181 = vxor.u32 %v165, 2147483648
        %v182 = vxor.u32 %v166, 2147483648
        %v183 = vxor.u32 %v167, 2147483648
        %v184 = vmul.f32 %v176, 1.442695
        %v185 = vpow.pop %v184
        %v186 = vmul.f32 %v177, 1.442695
        %v187 = vpow.pop %v186
        %v188 = vmul.f32 %v178, 1.442695
        %v189 = vpow.pop %v188
        %v190 = vmul.f32 %v179, 1.442695
        %v191 = vpow.pop %v190
        %v192 = vmul.f32 %v180, 1.442695
        %v193 = vpow.pop %v192
        %v194 = vmul.f32 %v181, 1.442695
        %v195 = vpow.pop %v194
        %v196 = vmul.f32 %v182, 1.442695
        %v197 = vpow.pop %v196
        %v198 = vmul.f32 %v183, 1.442695
        %v199 = vpow.pop %v198
        %v200 = vadd.f32 %v185, 1.0
        %v201 = vadd.f32 %v187, 1.0
        %v202 = vadd.f32 %v189, 1.0
        %v203 = vadd.f32 %v191, 1.0
        %v204 = vadd.f32 %v193, 1.0
        %v205 = vadd.f32 %v195, 1.0
        %v206 = vadd.f32 %v197, 1.0
        %v207 = vadd.f32 %v199, 1.0
        %v208 = vrcp.pop %v200
        %v209 = vmul.f32 %v200, %v208
        %v210 = vsub.f32 1.0, %v209
        %v211 = vmul.f32 %v208, %v210
        %v212 = vadd.f32 %v208, %v211
        %vm213 = vweird.f32 %v200
        %vm214 = vweird.f32 %v208
        %vm215 = vmor %vm213, %vm214
        %v216 = vsel %vm215, %v208, %v212
        %v217 = vand.u32 2147483647, %v200
        %vm218 = vcmp.eq.f32.partialorder %v217, 8.507059e+37
        %v219 = vand.u32 %v200, 2147483648
        %v220 = vor.u32 1.1754944e-38, %v219
        %v221 = vsel %vm218, %v220, %v216
        %v222 = vmul.f32 1.0, %v221
        %v223 = vrcp.pop %v201
        %v224 = vmul.f32 %v201, %v223
        %v225 = vsub.f32 1.0, %v224
        %v226 = vmul.f32 %v223, %v225
        %v227 = vadd.f32 %v223, %v226
        %vm228 = vweird.f32 %v201
        %vm229 = vweird.f32 %v223
        %vm230 = vmor %vm228, %vm229
        %v231 = vsel %vm230, %v223, %v227
        %v232 = vand.u32 2147483647, %v201
        %vm233 = vcmp.eq.f32.partialorder %v232, 8.507059e+37
        %v234 = vand.u32 %v201, 2147483648
        %v235 = vor.u32 1.1754944e-38, %v234
        %v236 = vsel %vm233, %v235, %v231
        %v237 = vmul.f32 1.0, %v236
        %v238 = vrcp.pop %v202
        %v239 = vmul.f32 %v202, %v238
        %v240 = vsub.f32 1.0, %v239
        %v241 = vmul.f32 %v238, %v240
        %v242 = vadd.f32 %v238, %v241
        %vm243 = vweird.f32 %v202
        %vm244 = vweird.f32 %v238
        %vm245 = vmor %vm243, %vm244
        %v246 = vsel %vm245, %v238, %v242
        %v247 = vand.u32 2147483647, %v202
        %vm248 = vcmp.eq.f32.partialorder %v247, 8.507059e+37
        %v249 = vand.u32 %v202, 2147483648
        %v250 = vor.u32 1.1754944e-38, %v249
        %v251 = vsel %vm248, %v250, %v246
        %v252 = vmul.f32 1.0, %v251
        %v253 = vrcp.pop %v203
        %v254 = vmul.f32 %v203, %v253
        %v255 = vsub.f32 1.0, %v254
        %v256 = vmul.f32 %v253, %v255
        %v257 = vadd.f32 %v253, %v256
        %vm258 = vweird.f32 %v203
        %vm259 = vweird.f32 %v253
        %vm260 = vmor %vm258, %vm259
        %v261 = vsel %vm260, %v253, %v257
        %v262 = vand.u32 2147483647, %v203
        %vm263 = vcmp.eq.f32.partialorder %v262, 8.507059e+37
        %v264 = vand.u32 %v203, 2147483648
        %v265 = vor.u32 1.1754944e-38, %v264
        %v266 = vsel %vm263, %v265, %v261
        %v267 = vmul.f32 1.0, %v266
        %v268 = vrcp.pop %v204
        %v269 = vmul.f32 %v204, %v268
        %v270 = vsub.f32 1.0, %v269
        %v271 = vmul.f32 %v268, %v270
        %v272 = vadd.f32 %v268, %v271
        %vm273 = vweird.f32 %v204
        %vm274 = vweird.f32 %v268
        %vm275 = vmor %vm273, %vm274
        %v276 = vsel %vm275, %v268, %v272
        %v277 = vand.u32 2147483647, %v204
        %vm278 = vcmp.eq.f32.partialorder %v277, 8.507059e+37
        %v279 = vand.u32 %v204, 2147483648
        %v280 = vor.u32 1.1754944e-38, %v279
        %v281 = vsel %vm278, %v280, %v276
        %v282 = vmul.f32 1.0, %v281
        %v283 = vrcp.pop %v205
        %v284 = vmul.f32 %v205, %v283
        %v285 = vsub.f32 1.0, %v284
        %v286 = vmul.f32 %v283, %v285
        %v287 = vadd.f32 %v283, %v286
        %vm288 = vweird.f32 %v205
        %vm289 = vweird.f32 %v283
        %vm290 = vmor %vm288, %vm289
        %v291 = vsel %vm290, %v283, %v287
        %v292 = vand.u32 2147483647, %v205
        %vm293 = vcmp.eq.f32.partialorder %v292, 8.507059e+37
        %v294 = vand.u32 %v205, 2147483648
        %v295 = vor.u32 1.1754944e-38, %v294
        %v296 = vsel %vm293, %v295, %v291
        %v297 = vmul.f32 1.0, %v296
        %v298 = vrcp.pop %v206
        %v299 = vmul.f32 %v206, %v298
        %v300 = vsub.f32 1.0, %v299
        %v301 = vmul.f32 %v298, %v300
        %v302 = vadd.f32 %v298, %v301
        %vm303 = vweird.f32 %v206
        %vm304 = vweird.f32 %v298
        %vm305 = vmor %vm303, %vm304
        %v306 = vsel %vm305, %v298, %v302
        %v307 = vand.u32 2147483647, %v206
        %vm308 = vcmp.eq.f32.partialorder %v307, 8.507059e+37
        %v309 = vand.u32 %v206, 2147483648
        %v310 = vor.u32 1.1754944e-38, %v309
        %v311 = vsel %vm308, %v310, %v306
        %v312 = vmul.f32 1.0, %v311
        %v313 = vrcp.pop %v207
        %v314 = vmul.f32 %v207, %v313
        %v315 = vsub.f32 1.0, %v314
        %v316 = vmul.f32 %v313, %v315
        %v317 = vadd.f32 %v313, %v316
        %vm318 = vweird.f32 %v207
        %vm319 = vweird.f32 %v313
        %vm320 = vmor %vm318, %vm319
        %v321 = vsel %vm320, %v313, %v317
        %v322 = vand.u32 2147483647, %v207
        %vm323 = vcmp.eq.f32.partialorder %v322, 8.507059e+37
        %v324 = vand.u32 %v207, 2147483648
        %v325 = vor.u32 1.1754944e-38, %v324
        %v326 = vsel %vm323, %v325, %v321
        %v327 = vmul.f32 1.0, %v326
        %v328 = vmul.f32 %v168, %v222
        %v329 = vmul.f32 %v169, %v237
        %v330 = vmul.f32 %v170, %v252
        %v331 = vmul.f32 %v171, %v267
        %v332 = vmul.f32 %v172, %v282
        %v333 = vmul.f32 %v173, %v297
        %v334 = vmul.f32 %v174, %v312
        %v335 = vmul.f32 %v175, %v327
        %vm336 = vcmask 130048
        %337 = vst.msk [vmem:[%s155] sm:$0xff] %vm336, %v328
        %338 = vst.msk [vmem:[%s155 + $0x8] sm:$0xff] %vm336, %v329
        %339 = vst.msk [vmem:[%s155 + $0x10] sm:$0xff] %vm336, %v330
        %340 = vst.msk [vmem:[%s155 + $0x18] sm:$0xff] %vm336, %v331
        %341 = vst.msk [vmem:[%s155 + $0x20] sm:$0xff] %vm336, %v332
        %342 = vst.msk [vmem:[%s155 + $0x28] sm:$0xff] %vm336, %v333
        %343 = vst.msk [vmem:[%s155 + $0x30] sm:$0xff] %vm336, %v334
        %344 = vst.msk [vmem:[%s155 + $0x38] sm:$0xff] %vm336, %v335
        %s345 = sand.u32 %s68, 1
        %s346 = scalar_lea.sflag [#allocation4], %s345
        %s347 = sand.u32 %s68, 1
        %s348 = smul.addr %s347, 64
        %s349 = scalar_lea.vmem [#allocation5], %s348
        // Predicated region
        $region29: #{tpu_custom_call.1} parent=23 // pred_check
          %p350 = pneg %p78
        $region30: #{tpu_custom_call.1} parent=23 // pred_check_branch
          %352 = sbr.rel (%p350) target = $region32
        $region31: #{tpu_custom_call.1} parent=23 // pred_region
          %s353 = smul.u32 4, %s22
          %s354 = smul.u32 2, %s23
          %356 = vsyncadd %s346, 0
          %s357 = smul.addr %s353, 2
          %s358 = sadd.s32 %s354, %s357
          %s359 = smul.addr %s358, 8
          %s360 = scalar_lea.hbm %s1, %s359
          %s361 = sshll.u32 %s349, 4
          %s362 = int_to_ptr.vmem [resolvable:$true] %s361
          %s363 = sshll.u32 %s360, 4
          %s364 = int_to_ptr.hbm [resolvable:$true] %s363
          %369 = dma.vmem_to_hbm [thread:$0]  %s362, 1024, %s364, %s346, 128, 128, 8
        $region32: #{tpu_custom_call.1} parent=23 // pred_fallthru
          _
      $region24: #{tpu_custom_call.1} parent=5 // pred_fallthru
        _
      %p370 = scmp.le.s32.totalorder 2, %s13
      // Predicated region
      $region33: #{tpu_custom_call.1} parent=5 // pred_check
        %p371 = pneg %p370
      $region34: #{tpu_custom_call.1} parent=5 // pred_check_branch
        %373 = sbr.rel (%p371) target = $region36
      $region35: #{tpu_custom_call.1} parent=5 // pred_region
        %s374 = ssub.s32 %s13, 2
        // Predicated region
        $region37: #{tpu_custom_call.1} parent=35 // pred_check
          %p375 = pneg %p84
        $region38: #{tpu_custom_call.1} parent=35 // pred_check_branch
          %377 = sbr.rel (%p375) target = $region40
        $region39: #{tpu_custom_call.1} parent=35 // pred_region
          %s378 = sand.u32 %s69, 1
          %s379 = scalar_lea.sflag [#allocation4], %s378
          %s380 = sand.u32 %s69, 1
          %s381 = smul.addr %s380, 64
          %s382 = scalar_lea.vmem [#allocation5], %s381
          %384 = dma.done %s379, 1024
        $region40: #{tpu_custom_call.1} parent=35 // pred_fallthru
          _
      $region36: #{tpu_custom_call.1} parent=5 // pred_fallthru
        _
    $region6: #{tpu_custom_call.1} parent=1 // loop_footer
      %s17 = sadd.s32 1, %s13
    $region7: #{tpu_custom_call.1} parent=1 // loop_footer_branch
      %12 = sbr.rel target = $region3
    $region8: #{tpu_custom_call.1} parent=1 // loop_exit
      _
    %385 = vsyncpa [#allocation3], 1
    %s386 = scalar_lea.sflag [#allocation3], 1
    %387 = vsyncpa %s386, 1
    %388 = vsyncpa [#allocation4], 1
    %s389 = scalar_lea.sflag [#allocation4], 1
    %390 = vsyncpa %s389, 1

</llo_original>
